<compile_context>
chip_gen: v7x
topology: tpu7x:2x2x1
jax: 0.10.0
libtpu: 0.0.40
codegen_flags: <defaults>
</compile_context>

<pallas_src>
import math
from functools import partial

import jax
import jax.numpy as jnp
from jax.experimental import pallas as pl
from jax.experimental.pallas import tpu as pltpu

LN_EPS = 1e-5
DEFAULT_ROW_TILE = 512   # rows per grid step; sweepable, sized well below VMEM limits


def _round_up(n, m):
    return ((n + m - 1) // m) * m


# ----------------------------- kernel bodies -----------------------------

def _ln_matmul_kernel(x_ref, g_ref, b_ref, w_ref, wb_ref, o_ref, *, eps):
    """out = LayerNorm(x) @ W + b   (LN fused into the projection)."""
    x = x_ref[...].astype(jnp.float32)
    mu = jnp.mean(x, axis=-1, keepdims=True)
    xc = x - mu
    var = jnp.mean(xc * xc, axis=-1, keepdims=True)
    y = xc * jax.lax.rsqrt(var + eps) * g_ref[...] + b_ref[...]
    out = jnp.dot(y, w_ref[...].astype(jnp.float32),
                  preferred_element_type=jnp.float32) + wb_ref[...]
    o_ref[...] = out.astype(o_ref.dtype)


def _matmul_kernel(x_ref, w_ref, wb_ref, o_ref):
    """out = x @ W + b   (plain projection, used for cross K/V)."""
    out = jnp.dot(x_ref[...].astype(jnp.float32), w_ref[...].astype(jnp.float32),
                  preferred_element_type=jnp.float32) + wb_ref[...]
    o_ref[...] = out.astype(o_ref.dtype)


def _matmul_residual_kernel(x_ref, r_ref, w_ref, wb_ref, o_ref):
    """out = residual + x @ W + b   (attention output projection + residual add)."""
    out = (r_ref[...].astype(jnp.float32)
           + jnp.dot(x_ref[...].astype(jnp.float32), w_ref[...].astype(jnp.float32),
                     preferred_element_type=jnp.float32) + wb_ref[...])
    o_ref[...] = out.astype(o_ref.dtype)


def _ln_ffn_residual_kernel(x_ref, g_ref, b_ref, w1_ref, b1_ref, w2_ref, b2_ref,
                            o_ref, *, eps):
    """out = x + conv2(relu(conv1(LayerNorm(x))))  — whole FFN block in one pass."""
    x = x_ref[...].astype(jnp.float32)
    mu = jnp.mean(x, axis=-1, keepdims=True)
    xc = x - mu
    var = jnp.mean(xc * xc, axis=-1, keepdims=True)
    y = xc * jax.lax.rsqrt(var + eps) * g_ref[...] + b_ref[...]
    h = jnp.dot(y, w1_ref[...], preferred_element_type=jnp.float32) + b1_ref[...]
    h = jnp.maximum(h, 0.0)                                   # relu
    out = x + jnp.dot(h, w2_ref[...], preferred_element_type=jnp.float32) + b2_ref[...]
    o_ref[...] = out.astype(o_ref.dtype)


def _mha_core_kernel(q_ref, k_ref, v_ref, o_ref, *, scale):
    """softmax(Q K^T * scale) V for one (batch, head) grid point (no mask)."""
    q = q_ref[...].astype(jnp.float32)   # (Lq, Dh)
    k = k_ref[...].astype(jnp.float32)   # (Lk, Dh)
    v = v_ref[...].astype(jnp.float32)   # (Lk, Dh)
    s = jax.lax.dot_general(q, k, (((1,), (1,)), ((), ())),
                            preferred_element_type=jnp.float32) * scale   # (Lq, Lk)
    s = s - jnp.max(s, axis=-1, keepdims=True)
    p = jnp.exp(s)
    p = p / jnp.sum(p, axis=-1, keepdims=True)
    o = jnp.dot(p, v, preferred_element_type=jnp.float32)
    o_ref[...] = o.astype(o_ref.dtype)


# ----------------------------- pallas_call launchers -----------------------------

def _row_tiled_call(kernel, row_inputs, const_inputs, out_dim, *,
                    row_tile=DEFAULT_ROW_TILE, out_dtype=None, cost_estimate=None):
    """Launch `kernel` over row tiles of the 2D `row_inputs`; `const_inputs` stay resident."""
    n = row_inputs[0].shape[0]
    tr = min(row_tile, _round_up(n, 8))
    n_pad = _round_up(n, tr)
    padded = [jnp.pad(a, ((0, n_pad - n), (0, 0))) if n_pad != n else a
              for a in row_inputs]
    in_specs = [pl.BlockSpec((tr, a.shape[1]), lambda i: (i, 0)) for a in padded]
    in_specs += [pl.BlockSpec(c.shape, lambda i: (0, 0)) for c in const_inputs]
    out_dtype = out_dtype or row_inputs[0].dtype
    out = pl.pallas_call(
        kernel,
        out_shape=jax.ShapeDtypeStruct((n_pad, out_dim), out_dtype),
        grid_spec=pltpu.PrefetchScalarGridSpec(
            num_scalar_prefetch=0,
            grid=(n_pad // tr,),
            in_specs=in_specs,
            out_specs=pl.BlockSpec((tr, out_dim), lambda i: (i, 0)),
        ),
        compiler_params=pltpu.CompilerParams(dimension_semantics=("parallel",)),
        cost_estimate=cost_estimate,
    )(*padded, *const_inputs)
    return out[:n] if n_pad != n else out


def _mha_core(q, k, v, *, scale):
    """q: (BH, Lq, Dh), k/v: (BH, Lk, Dh) -> (BH, Lq, Dh); one (batch*head) per grid step."""
    bh, lq, dh = q.shape
    lk = k.shape[1]
    return pl.pallas_call(
        partial(_mha_core_kernel, scale=scale),
        out_shape=jax.ShapeDtypeStruct((bh, lq, dh), q.dtype),
        grid_spec=pltpu.PrefetchScalarGridSpec(
            num_scalar_prefetch=0,
            grid=(bh,),
            in_specs=[pl.BlockSpec((None, lq, dh), lambda i: (i, 0, 0)),
                      pl.BlockSpec((None, lk, dh), lambda i: (i, 0, 0)),
                      pl.BlockSpec((None, lk, dh), lambda i: (i, 0, 0))],
            out_specs=pl.BlockSpec((None, lq, dh), lambda i: (i, 0, 0)),
        ),
        compiler_params=pltpu.CompilerParams(dimension_semantics=("parallel",)),
    )(q, k, v)


# ----------------------------- glue (reshapes only) -----------------------------

def _localize(x, d_y):
    """rearrange 'batch (variables len) dim -> (variables batch) len dim'."""
    b, l, d = x.shape
    lv = l // d_y
    return x.reshape(b, d_y, lv, d).transpose(1, 0, 2, 3).reshape(d_y * b, lv, d)


def _reverse_localize(x, d_y, batch):
    """rearrange '(variables batch) len dim -> batch (variables len) dim'."""
    _, lv, d = x.shape
    return x.reshape(d_y, batch, lv, d).transpose(1, 0, 2, 3).reshape(batch, d_y * lv, d)


def _split_heads(x2d, b, l, h):
    d = x2d.shape[1]
    dh = d // h
    return x2d.reshape(b, l, h, dh).transpose(0, 2, 1, 3).reshape(b * h, l, dh)


def _merge_heads(xh, b, l, h):
    dh = xh.shape[-1]
    return xh.reshape(b, h, l, dh).transpose(0, 2, 1, 3).reshape(b * l, h * dh)


def _multihead_attention(q2d, k2d, v2d, bq, lq, lk, n_heads):
    d = q2d.shape[1]
    dh = d // n_heads
    qh = _split_heads(q2d, bq, lq, n_heads)
    kh = _split_heads(k2d, bq, lk, n_heads)
    vh = _split_heads(v2d, bq, lk, n_heads)
    oh = _mha_core(qh, kh, vh, scale=1.0 / math.sqrt(dh))
    return _merge_heads(oh, bq, lq, n_heads)


def _self_attention_block(x, ln_g, ln_b, ap, n_heads, *, d_y=None, localize=False):
    """x <- x + OutProj(Attn(LN(x)))  (optionally on the Localized per-variable layout)."""
    b = x.shape[0]
    xq = _localize(x, d_y) if localize else x
    bq, lq, d = xq.shape
    x2d = xq.reshape(bq * lq, d)
    wqkv = jnp.concatenate([ap['wq'], ap['wk'], ap['wv']], axis=1)   # (D, 3D) lane-dense
    bqkv = jnp.concatenate([ap['bq'], ap['bk'], ap['bv']], axis=1)
    qkv = _row_tiled_call(partial(_ln_matmul_kernel, eps=LN_EPS),
                          [x2d], [ln_g, ln_b, wqkv, bqkv], 3 * d)
    q2d, k2d, v2d = qkv[:, :d], qkv[:, d:2 * d], qkv[:, 2 * d:]
    attn2d = _multihead_attention(q2d, k2d, v2d, bq, lq, lq, n_heads)
    out2d = _row_tiled_call(_matmul_residual_kernel,
                            [attn2d, x2d], [ap['wo'], ap['bo']], d)
    out = out2d.reshape(bq, lq, d)
    return _reverse_localize(out, d_y, b) if localize else out


def _cross_attention_block(x, cross, ln_g, ln_b, ap, n_heads, *, d_y=None, localize=False):
    """x <- x + OutProj(Attn(q=LN(x), kv=cross))."""
    b = x.shape[0]
    if localize:
        xq = _localize(x, d_y)
        kv = _localize(cross, d_y)[: d_y * b]     # cross_local[: d_y * bs]
    else:
        xq, kv = x, cross
    bq, lq, d = xq.shape
    lk = kv.shape[1]
    x2d = xq.reshape(bq * lq, d)
    q2d = _row_tiled_call(partial(_ln_matmul_kernel, eps=LN_EPS),
                          [x2d], [ln_g, ln_b, ap['wq'], ap['bq']], d)
    wkv = jnp.concatenate([ap['wk'], ap['wv']], axis=1)              # (D, 2D) lane-dense
    bkv = jnp.concatenate([ap['bk'], ap['bv']], axis=1)
    kv2d = _row_tiled_call(_matmul_kernel, [kv.reshape(bq * lk, d)], [wkv, bkv], 2 * d)
    k2d, v2d = kv2d[:, :d], kv2d[:, d:]
    attn2d = _multihead_attention(q2d, k2d, v2d, bq, lq, lk, n_heads)
    out2d = _row_tiled_call(_matmul_residual_kernel,
                            [attn2d, x2d], [ap['wo'], ap['bo']], d)
    out = out2d.reshape(bq, lq, d)
    return _reverse_localize(out, d_y, b) if localize else out


def _ffn_block(x, ln_g, ln_b, w1, b1, w2, b2):
    b, l, d = x.shape
    f = w1.shape[1]
    n = b * l
    cost = pl.CostEstimate(flops=4 * n * d * f, transcendentals=0,
                           bytes_accessed=4 * (2 * n * d + 2 * d * f + f + d))
    out2d = _row_tiled_call(partial(_ln_ffn_residual_kernel, eps=LN_EPS),
                            [x.reshape(n, d)], [ln_g, ln_b, w1, b1, w2, b2], d,
                            cost_estimate=cost)
    return out2d.reshape(b, l, d)


def decoder_layer_forward(x, cross, params, *, d_y, n_heads,
                          time_windows=1, time_window_offset=0):
    """Eval-mode DecoderLayer forward. Returns (output, attn=None)."""
    # TODO(synk): attn_mask, time_windows>1, dropout / batch/power/scale norms and
    # output_cross_attn are not implemented (mask-free, time_windows==1, eval path).
    assert time_windows == 1 and time_window_offset == 0
    p = params
    x = _self_attention_block(x, p['ln1_g'], p['ln1_b'], p['local_self'], n_heads,
                              d_y=d_y, localize=True)
    x = _self_attention_block(x, p['ln2_g'], p['ln2_b'], p['global_self'], n_heads)
    x = _cross_attention_block(x, cross, p['ln3_g'], p['ln3_b'], p['local_cross'], n_heads,
                               d_y=d_y, localize=True)
    x = _cross_attention_block(x, cross, p['ln4_g'], p['ln4_b'], p['global_cross'], n_heads)
    x = _ffn_block(x, p['ln5_g'], p['ln5_b'], p['w1'], p['b1'], p['w2'], p['b2'])
    return x, None


# ----------------------------- pure-JAX reference -----------------------------

def _layernorm_ref(x, g, b, eps=LN_EPS):
    mu = jnp.mean(x, axis=-1, keepdims=True)
    var = jnp.mean((x - mu) ** 2, axis=-1, keepdims=True)
    return (x - mu) / jnp.sqrt(var + eps) * g + b


def _mha_ref(q_in, k_in, v_in, p, h):
    bq, lq, d = q_in.shape
    lk = k_in.shape[1]
    dh = d // h
    q = (q_in @ p['wq'] + p['bq'][0]).reshape(bq, lq, h, dh)
    k = (k_in @ p['wk'] + p['bk'][0]).reshape(bq, lk, h, dh)
    v = (v_in @ p['wv'] + p['bv'][0]).reshape(bq, lk, h, dh)
    s = jnp.einsum('blhe,bshe->bhls', q, k) / math.sqrt(dh)
    a = jax.nn.softmax(s, axis=-1)
    o = jnp.einsum('bhls,bshd->blhd', a, v).reshape(bq, lq, d)
    return o @ p['wo'] + p['bo'][0]


def decoder_layer_reference(x, cross, p, *, d_y, n_heads):
    b = x.shape[0]
    x1 = _localize(_layernorm_ref(x, p['ln1_g'][0], p['ln1_b'][0]), d_y)
    x = x + _reverse_localize(_mha_ref(x1, x1, x1, p['local_self'], n_heads), d_y, b)
    x1 = _layernorm_ref(x, p['ln2_g'][0], p['ln2_b'][0])
    x = x + _mha_ref(x1, x1, x1, p['global_self'], n_heads)
    x1 = _localize(_layernorm_ref(x, p['ln3_g'][0], p['ln3_b'][0]), d_y)
    cl = _localize(cross, d_y)[: d_y * b]
    x = x + _reverse_localize(_mha_ref(x1, cl, cl, p['local_cross'], n_heads), d_y, b)
    x1 = _layernorm_ref(x, p['ln4_g'][0], p['ln4_b'][0])
    x = x + _mha_ref(x1, cross, cross, p['global_cross'], n_heads)
    x1 = _layernorm_ref(x, p['ln5_g'][0], p['ln5_b'][0])
    h = jnp.maximum(x1 @ p['w1'] + p['b1'][0], 0.0)
    return x + h @ p['w2'] + p['b2'][0]


# ----------------------------- demo / self-test -----------------------------

if __name__ == "__main__":
    batch, d_y = 2, 2
    lv_dec, lv_enc = 8, 12
    l_dec, l_enc = d_y * lv_dec, d_y * lv_enc          # 16 decoder / 24 encoder tokens
    d_model, n_heads = 32, 4
    d_ff = 4 * d_model

    keys = iter(jax.random.split(jax.random.PRNGKey(0), 64))

    def rand(shape, scale=1.0):
        return scale * jax.random.normal(next(keys), shape, dtype=jnp.float32)

    def attn_params():
        s = 1.0 / math.sqrt(d_model)
        return dict(wq=rand((d_model, d_model), s), bq=rand((1, d_model), 0.02),
                    wk=rand((d_model, d_model), s), bk=rand((1, d_model), 0.02),
                    wv=rand((d_model, d_model), s), bv=rand((1, d_model), 0.02),
                    wo=rand((d_model, d_model), s), bo=rand((1, d_model), 0.02))

    def ln_params():
        return 1.0 + rand((1, d_model), 0.1), rand((1, d_model), 0.1)

    ln1_g, ln1_b = ln_params(); ln2_g, ln2_b = ln_params()
    ln3_g, ln3_b = ln_params(); ln4_g, ln4_b = ln_params(); ln5_g, ln5_b = ln_params()

    params = dict(
        local_self=attn_params(), global_self=attn_params(),
        local_cross=attn_params(), global_cross=attn_params(),
        ln1_g=ln1_g, ln1_b=ln1_b, ln2_g=ln2_g, ln2_b=ln2_b,
        ln3_g=ln3_g, ln3_b=ln3_b, ln4_g=ln4_g, ln4_b=ln4_b,
        ln5_g=ln5_g, ln5_b=ln5_b,
        w1=rand((d_model, d_ff), 1.0 / math.sqrt(d_model)), b1=rand((1, d_ff), 0.02),
        w2=rand((d_ff, d_model), 1.0 / math.sqrt(d_ff)), b2=rand((1, d_model), 0.02),
    )

    x = rand((batch, l_dec, d_model))
    cross = rand((batch, l_enc, d_model))

    out, attn = decoder_layer_forward(x, cross, params, d_y=d_y, n_heads=n_heads)
    out = jax.block_until_ready(out)

    ref = decoder_layer_reference(x, cross, params, d_y=d_y, n_heads=n_heads)
    assert out.shape == (batch, l_dec, d_model), out.shape
    max_err = float(jnp.max(jnp.abs(out - ref)))
    assert max_err < 5e-2, max_err

    print("KERNEL_OK")
</pallas_src>

<mosaic_0001>
module attributes {stable_mosaic.version = 11 : i64} {
  func.func @_ln_matmul_kernel(%arg0: i32, %arg1: memref<32x32xf32, #tpu.memory_space<vmem>>, %arg2: memref<1x32xf32, #tpu.memory_space<vmem>>, %arg3: memref<1x32xf32, #tpu.memory_space<vmem>>, %arg4: memref<32x96xf32, #tpu.memory_space<vmem>>, %arg5: memref<1x96xf32, #tpu.memory_space<vmem>>, %arg6: memref<32x96xf32, #tpu.memory_space<vmem>>) attributes {dimension_semantics = [#tpu.dimension_semantics<parallel>], iteration_bounds = array<i64: 1>, scalar_prefetch = 0 : i64, scratch_operands = 0 : i64, tpu.core_type = #tpu.core_type<tc>, window_params = [{transform_indices = @transform_0, window_bounds = array<i64: 32, 32>}, {pipeline_mode = #tpu.pipeline_mode<synchronous>, transform_indices = @transform_1, window_bounds = array<i64: 1, 32>}, {pipeline_mode = #tpu.pipeline_mode<synchronous>, transform_indices = @transform_2, window_bounds = array<i64: 1, 32>}, {pipeline_mode = #tpu.pipeline_mode<synchronous>, transform_indices = @transform_3, window_bounds = array<i64: 32, 96>}, {pipeline_mode = #tpu.pipeline_mode<synchronous>, transform_indices = @transform_4, window_bounds = array<i64: 1, 96>}, {transform_indices = @transform_5, window_bounds = array<i64: 32, 96>}]} {
    %c0 = arith.constant 0 : index
    %c0_0 = arith.constant 0 : index
    %0 = vector.load %arg1[%c0, %c0_0] : memref<32x32xf32, #tpu.memory_space<vmem>>, vector<32x32xf32>
    %cst = arith.constant dense<0.000000e+00> : vector<32xf32>
    %1 = vector.multi_reduction <add>, %0, %cst [1] : vector<32x32xf32> to vector<32xf32>
    %2 = vector.shape_cast %1 : vector<32xf32> to vector<32x1xf32>
    %cst_1 = arith.constant 3.200000e+01 : f32
    %3 = vector.broadcast %cst_1 : f32 to vector<32x1xf32>
    %4 = arith.divf %2, %3 : vector<32x1xf32>
    %5 = vector.broadcast %4 : vector<32x1xf32> to vector<32x32xf32>
    %6 = arith.subf %0, %5 : vector<32x32xf32>
    %7 = arith.mulf %6, %6 : vector<32x32xf32>
    %cst_2 = arith.constant dense<0.000000e+00> : vector<32xf32>
    %8 = vector.multi_reduction <add>, %7, %cst_2 [1] : vector<32x32xf32> to vector<32xf32>
    %9 = vector.shape_cast %8 : vector<32xf32> to vector<32x1xf32>
    %cst_3 = arith.constant 3.200000e+01 : f32
    %10 = vector.broadcast %cst_3 : f32 to vector<32x1xf32>
    %11 = arith.divf %9, %10 : vector<32x1xf32>
    %cst_4 = arith.constant 9.99999974E-6 : f32
    %12 = vector.broadcast %cst_4 : f32 to vector<32x1xf32>
    %13 = arith.addf %11, %12 : vector<32x1xf32>
    %14 = math.rsqrt %13 : vector<32x1xf32>
    %15 = vector.broadcast %14 : vector<32x1xf32> to vector<32x32xf32>
    %16 = arith.mulf %6, %15 : vector<32x32xf32>
    %c0_5 = arith.constant 0 : index
    %c0_6 = arith.constant 0 : index
    %17 = vector.load %arg2[%c0_5, %c0_6] : memref<1x32xf32, #tpu.memory_space<vmem>>, vector<1x32xf32>
    %18 = vector.broadcast %17 : vector<1x32xf32> to vector<32x32xf32>
    %19 = arith.mulf %16, %18 : vector<32x32xf32>
    %c0_7 = arith.constant 0 : index
    %c0_8 = arith.constant 0 : index
    %20 = vector.load %arg3[%c0_7, %c0_8] : memref<1x32xf32, #tpu.memory_space<vmem>>, vector<1x32xf32>
    %21 = vector.broadcast %20 : vector<1x32xf32> to vector<32x32xf32>
    %22 = arith.addf %19, %21 : vector<32x32xf32>
    %c0_9 = arith.constant 0 : index
    %c0_10 = arith.constant 0 : index
    %23 = vector.load %arg4[%c0_9, %c0_10] : memref<32x96xf32, #tpu.memory_space<vmem>>, vector<32x96xf32>
    %cst_11 = arith.constant dense<0.000000e+00> : vector<32x96xf32>
    %24 = tpu.matmul %22, %23, %cst_11 {dimension_numbers = #tpu.dot_dimension_numbers<[1], [0], [0], [1], [0, 0, 1, 1], [], []>} : vector<32x32xf32>, vector<32x96xf32>, vector<32x96xf32> -> vector<32x96xf32>
    %c0_12 = arith.constant 0 : index
    %c0_13 = arith.constant 0 : index
    %25 = vector.load %arg5[%c0_12, %c0_13] : memref<1x96xf32, #tpu.memory_space<vmem>>, vector<1x96xf32>
    %26 = vector.broadcast %25 : vector<1x96xf32> to vector<32x96xf32>
    %27 = arith.addf %24, %26 : vector<32x96xf32>
    %c0_14 = arith.constant 0 : index
    %c0_15 = arith.constant 0 : index
    %28 = vector.load %arg6[%c0_14, %c0_15] : memref<32x96xf32, #tpu.memory_space<vmem>>, vector<32x96xf32>
    tpu.vector_store %arg6[%c0_14, %c0_15], %27 {strides = array<i32>} : memref<32x96xf32, #tpu.memory_space<vmem>>, vector<32x96xf32>,
    return
  }
  func.func @transform_0(%arg0: i32) -> (i32, i32) {
    %c0_i32 = arith.constant 0 : i32
    %c0_i32_0 = arith.constant 0 : i32
    return %arg0, %c0_i32 : i32, i32
  }
  func.func @transform_1(%arg0: i32) -> (i32, i32) {
    %c0_i32 = arith.constant 0 : i32
    %c0_i32_0 = arith.constant 0 : i32
    %c0_i32_1 = arith.constant 0 : i32
    return %c0_i32, %c0_i32_0 : i32, i32
  }
  func.func @transform_2(%arg0: i32) -> (i32, i32) {
    %c0_i32 = arith.constant 0 : i32
    %c0_i32_0 = arith.constant 0 : i32
    %c0_i32_1 = arith.constant 0 : i32
    return %c0_i32, %c0_i32_0 : i32, i32
  }
  func.func @transform_3(%arg0: i32) -> (i32, i32) {
    %c0_i32 = arith.constant 0 : i32
    %c0_i32_0 = arith.constant 0 : i32
    %c0_i32_1 = arith.constant 0 : i32
    return %c0_i32, %c0_i32_0 : i32, i32
  }
  func.func @transform_4(%arg0: i32) -> (i32, i32) {
    %c0_i32 = arith.constant 0 : i32
    %c0_i32_0 = arith.constant 0 : i32
    %c0_i32_1 = arith.constant 0 : i32
    return %c0_i32, %c0_i32_0 : i32, i32
  }
  func.func @transform_5(%arg0: i32) -> (i32, i32) {
    %c0_i32 = arith.constant 0 : i32
    %c0_i32_0 = arith.constant 0 : i32
    return %arg0, %c0_i32 : i32, i32
  }
}

</mosaic_0001>

<llo_original>
// kernel: tpu_custom_call.1
$region0: #{tpu_custom_call.1}
  #allocation0 [shape = 'u32[]', space=smem, size = 0x4, offset = 0x4, fixed_abs, tag = 'smem constant byte address 0x4 - core index']
  #allocation1 [shape = 'u32[144,128]{1,0:T(1,128)}', space=vmem, size = 0x12000, scoped, tag = 'internal scratch']
  %s0 = inlined_call_operand.hbm [shape: f32[32,32], index: 0, kind: input, shape index: {}]
  %s1 = inlined_call_operand.vmem [shape: f32[1,32], index: 1, kind: input, shape index: {}]
  %s2 = inlined_call_operand.vmem [shape: f32[1,32], index: 2, kind: input, shape index: {}]
  %s3 = inlined_call_operand.hbm [shape: f32[32,96], index: 3, kind: input, shape index: {}]
  %s4 = inlined_call_operand.vmem [shape: f32[1,96], index: 4, kind: input, shape index: {}]
  %s5 = inlined_call_operand.hbm [shape: f32[32,96], index: 5, kind: output, shape index: {}]
  %s6 = sld [smem:[#allocation0]]
  $region38: #{tpu_custom_call.1} parent=0
    _
  %s8 = ssub.s32 1, %s6
  %s9 = scalar_select 0, %s8, %s6
  $region1: #{tpu_custom_call.1} parent=0
    #allocation2 [shape = 'u8[16384]{0}', space=vmem, size = 0x4000, scoped, tag = 'input window, operand 0, single buffered']
    #allocation3 [shape = 's32[1]{0}', space=sflag, size = 0x4, scoped, tag = 'scoped memory for tpu_custom_call.1']
    #allocation4 [shape = 's32[1]{0}', space=sflag, size = 0x4, scoped, tag = 'scoped memory for tpu_custom_call.1']
    #allocation5 [shape = 'u8[16384]{0}', space=vmem, size = 0x4000, scoped, tag = 'input window, operand 3, single buffered']
    #allocation6 [shape = 's32[1]{0}', space=sflag, size = 0x4, scoped, tag = 'scoped memory for tpu_custom_call.1']
    #allocation7 [shape = 'u8[16384]{0}', space=vmem, size = 0x4000, scoped, tag = 'output window, operand 0, single buffered']
    %10 = vsyncpa [#allocation3], 0
    %11 = vsyncpa [#allocation6], 0
    %12 = vsyncpa [#allocation4], 0
    // Predicated region
    $region2: #{tpu_custom_call.1} parent=1 // pred_check
      _
    $region3: #{tpu_custom_call.1} parent=1 // pred_check_branch
      %14 = sbr.rel (0) target = $region5
    $region4: #{tpu_custom_call.1} parent=1 // pred_region
      %s16 = ssub.s32 512, 512
      %17 = vsyncadd [#allocation3], %s16
      %s18 = sshll.u32 [#allocation2], 4
      %s19 = int_to_ptr.vmem [resolvable:$true] %s18
      %24 = dma.hbm_to_vmem [thread:$0]  %s0, 512, %s19, [#allocation3], 128, 128, 8
    $region5: #{tpu_custom_call.1} parent=1 // pred_fallthru
      _
    // Predicated region
    $region6: #{tpu_custom_call.1} parent=1 // pred_check
      _
    $region7: #{tpu_custom_call.1} parent=1 // pred_check_branch
      %26 = sbr.rel (0) target = $region9
    $region8: #{tpu_custom_call.1} parent=1 // pred_region
      _
    $region9: #{tpu_custom_call.1} parent=1 // pred_fallthru
      _
    // Predicated region
    $region10: #{tpu_custom_call.1} parent=1 // pred_check
      _
    $region11: #{tpu_custom_call.1} parent=1 // pred_check_branch
      %28 = sbr.rel (0) target = $region13
    $region12: #{tpu_custom_call.1} parent=1 // pred_region
      _
    $region13: #{tpu_custom_call.1} parent=1 // pred_fallthru
      _
    // Predicated region
    $region14: #{tpu_custom_call.1} parent=1 // pred_check
      _
    $region15: #{tpu_custom_call.1} parent=1 // pred_check_branch
      %30 = sbr.rel (0) target = $region17
    $region16: #{tpu_custom_call.1} parent=1 // pred_region
      %s32 = ssub.s32 512, 512
      %33 = vsyncadd [#allocation6], %s32
      %s34 = sshll.u32 [#allocation5], 4
      %s35 = int_to_ptr.vmem [resolvable:$true] %s34
      %40 = dma.hbm_to_vmem [thread:$0]  %s3, 512, %s35, [#allocation6], 128, 128, 8
    $region17: #{tpu_custom_call.1} parent=1 // pred_fallthru
      _
    // Predicated region
    $region18: #{tpu_custom_call.1} parent=1 // pred_check
      _
    $region19: #{tpu_custom_call.1} parent=1 // pred_check_branch
      %42 = sbr.rel (0) target = $region21
    $region20: #{tpu_custom_call.1} parent=1 // pred_region
      _
    $region21: #{tpu_custom_call.1} parent=1 // pred_fallthru
      _
    // Predicated region
    $region22: #{tpu_custom_call.1} parent=1 // pred_check
      _
    $region23: #{tpu_custom_call.1} parent=1 // pred_check_branch
      %44 = sbr.rel (0) target = $region25
    $region24: #{tpu_custom_call.1} parent=1 // pred_region
      %45 = dma.done [#allocation3], 512
    $region25: #{tpu_custom_call.1} parent=1 // pred_fallthru
      _
    // Predicated region
    $region26: #{tpu_custom_call.1} parent=1 // pred_check
      _
    $region27: #{tpu_custom_call.1} parent=1 // pred_check_branch
      %47 = sbr.rel (0) target = $region29
    $region28: #{tpu_custom_call.1} parent=1 // pred_region
      %48 = dma.done [#allocation6], 512
    $region29: #{tpu_custom_call.1} parent=1 // pred_fallthru
      _
    %v49 = vld [vmem:[#allocation2] sm:$0xff]
    %v50 = vld [vmem:[#allocation2 + $0x8] sm:$0xff]
    %v51 = vld [vmem:[#allocation2 + $0x10] sm:$0xff]
    %v52 = vld [vmem:[#allocation2 + $0x18] sm:$0xff]
    %vm53 = vcmask 261120
    %v54 = vsel %vm53, %v49, 0.0
    %55 = vadd.xlane.f32.xlu0 %v54
    %v56 = vpop.xlane.xlu0 %55
    %v57 = vsel %vm53, %v50, 0.0
    %58 = vadd.xlane.f32.xlu0 %v57
    %v59 = vpop.xlane.xlu0 %58
    %v60 = vsel %vm53, %v51, 0.0
    %61 = vadd.xlane.f32.xlu0 %v60
    %v62 = vpop.xlane.xlu0 %61
    %v63 = vsel %vm53, %v52, 0.0
    %64 = vadd.xlane.f32.xlu0 %v63
    %v65 = vpop.xlane.xlu0 %64
    %v66 = vrcp.pop 32.0
    %v67 = vmul.f32 %v56, %v66
    %v68 = vmul.f32 %v59, %v66
    %v69 = vmul.f32 %v62, %v66
    %v70 = vmul.f32 %v65, %v66
    %v71 = vsub.f32 %v49, %v67
    %v72 = vsub.f32 %v50, %v68
    %v73 = vsub.f32 %v51, %v69
    %v74 = vsub.f32 %v52, %v70
    %v75 = vmul.f32 %v71, %v71
    %v76 = vmul.f32 %v72, %v72
    %v77 = vmul.f32 %v73, %v73
    %v78 = vmul.f32 %v74, %v74
    %v79 = vsel %vm53, %v75, 0.0
    %80 = vadd.xlane.f32.xlu0 %v79
    %v81 = vpop.xlane.xlu0 %80
    %v82 = vsel %vm53, %v76, 0.0
    %83 = vadd.xlane.f32.xlu0 %v82
    %v84 = vpop.xlane.xlu0 %83
    %v85 = vsel %vm53, %v77, 0.0
    %86 = vadd.xlane.f32.xlu0 %v85
    %v87 = vpop.xlane.xlu0 %86
    %v88 = vsel %vm53, %v78, 0.0
    %89 = vadd.xlane.f32.xlu0 %v88
    %v90 = vpop.xlane.xlu0 %89
    %v91 = vmul.f32 %v81, %v66
    %v92 = vmul.f32 %v84, %v66
    %v93 = vmul.f32 %v87, %v66
    %v94 = vmul.f32 %v90, %v66
    %v95 = vadd.f32 %v91, 1e-05
    %v96 = vadd.f32 %v92, 1e-05
    %v97 = vadd.f32 %v93, 1e-05
    %v98 = vadd.f32 %v94, 1e-05
    %v99 = vrsqrt.pop %v95
    %v100 = vrsqrt.pop %v96
    %v101 = vrsqrt.pop %v97
    %v102 = vrsqrt.pop %v98
    %v103 = vmul.f32 %v71, %v99
    %v104 = vmul.f32 %v72, %v100
    %v105 = vmul.f32 %v73, %v101
    %v106 = vmul.f32 %v74, %v102
    %v107 = vld [vmem:[%s1] sm:$0x1]
    %v109 = vlaneseq
    %v110 = vshrl.u32 %v109, 7
    %v111 = vsub.s32 0, %v110
    %v112 = vrot.slane %v107, %v111
    %v114 = vmul.f32 %v103, %v112
    %v115 = vmul.f32 %v104, %v112
    %v116 = vmul.f32 %v105, %v112
    %v117 = vmul.f32 %v106, %v112
    %v118 = vld [vmem:[%s2] sm:$0x1]
    %v120 = vlaneseq
    %v121 = vshrl.u32 %v120, 7
    %v122 = vsub.s32 0, %v121
    %v123 = vrot.slane %v118, %v122
    %v125 = vadd.f32 %v114, %v123
    %v126 = vadd.f32 %v115, %v123
    %v127 = vadd.f32 %v116, %v123
    %v128 = vadd.f32 %v117, %v123
    %v129 = vld [vmem:[#allocation5] sm:$0xff]
    %v130 = vld [vmem:[#allocation5 + $0x8] sm:$0xff]
    %v131 = vld [vmem:[#allocation5 + $0x10] sm:$0xff]
    %v132 = vld [vmem:[#allocation5 + $0x18] sm:$0xff]
    %v133 = vld [vmem:[%s4] sm:$0x1]
    %v135 = vlaneseq
    %v136 = vshrl.u32 %v135, 7
    %v137 = vsub.s32 0, %v136
    %v138 = vrot.slane %v133, %v137
    %v141 = vsel %vm53, %v125, 0
    %v144 = vsel %vm53, %v126, 0
    %v147 = vsel %vm53, %v127, 0
    %v150 = vsel %vm53, %v128, 0
    %152 = vmatprep.subr.mxu0 0.0
    %153 = vmatpush1.msra.mxu0 %v129
    %154 = vmatprep.subr.mxu0 0.0
    %155 = vmatpush1.msra.mxu0 %v130
    %156 = vmatprep.subr.mxu0 0.0
    %157 = vmatpush1.msra.mxu0 %v131
    %158 = vmatprep.subr.mxu0 0.0
    %159 = vmatpush1.msra.mxu0 %v132
    %160 = vmatprep.subr.mxu0 0.0
    %161 = vmatpush1.msra.mxu0 0.0
    %162 = vmatprep.subr.mxu0 0.0
    %163 = vmatpush1.msra.mxu0 0.0
    %164 = vmatprep.subr.mxu0 0.0
    %165 = vmatpush1.msra.mxu0 0.0
    %166 = vmatprep.subr.mxu0 0.0
    %167 = vmatpush1.msra.mxu0 0.0
    %168 = vmatprep.subr.mxu0 0.0
    %169 = vmatpush1.msra.mxu0 0.0
    %170 = vmatprep.subr.mxu0 0.0
    %171 = vmatpush1.msra.mxu0 0.0
    %172 = vmatprep.subr.mxu0 0.0
    %173 = vmatpush1.msra.mxu0 0.0
    %174 = vmatprep.subr.mxu0 0.0
    %175 = vmatpush1.msra.mxu0 0.0
    %176 = vmatprep.subr.mxu0 0.0
    %177 = vmatpush1.msra.mxu0 0.0
    %178 = vmatprep.subr.mxu0 0.0
    %179 = vmatpush1.msra.mxu0 0.0
    %180 = vmatprep.subr.mxu0 0.0
    %181 = vmatpush1.msra.mxu0 0.0
    %182 = vmatprep.subr.mxu0 0.0
    %183 = vmatpush1.msra.mxu0 0.0
    %184 = vmatprep.subr.mxu0 0.0
    %185 = vmatpush1.msra.mxu0 0.0
    %186 = vmatprep.subr.mxu0 0.0
    %187 = vmatpush1.msra.mxu0 0.0
    %188 = vmatprep.subr.mxu0 0.0
    %189 = vmatpush1.msra.mxu0 0.0
    %190 = vmatprep.subr.mxu0 0.0
    %191 = vmatpush1.msra.mxu0 0.0
    %192 = vmatprep.subr.mxu0 0.0
    %193 = vmatpush1.msra.mxu0 0.0
    %194 = vmatprep.subr.mxu0 0.0
    %195 = vmatpush1.msra.mxu0 0.0
    %196 = vmatprep.subr.mxu0 0.0
    %197 = vmatpush1.msra.mxu0 0.0
    %198 = vmatprep.subr.mxu0 0.0
    %199 = vmatpush1.msra.mxu0 0.0
    %200 = vmatprep.subr.mxu0 0.0
    %201 = vmatpush1.msra.mxu0 0.0
    %202 = vmatprep.subr.mxu0 0.0
    %203 = vmatpush1.msra.mxu0 0.0
    %204 = vmatprep.subr.mxu0 0.0
    %205 = vmatpush1.msra.mxu0 0.0
    %206 = vmatprep.subr.mxu0 0.0
    %207 = vmatpush1.msra.mxu0 0.0
    %208 = vmatprep.subr.mxu0 0.0
    %209 = vmatpush1.msra.mxu0 0.0
    %210 = vmatprep.subr.mxu0 0.0
    %211 = vmatpush1.msra.mxu0 0.0
    %212 = vmatprep.subr.mxu0 0.0
    %213 = vmatpush1.msra.mxu0 0.0
    %214 = vmatprep.subr.mxu0 0.0
    %215 = vmatpush1.msra.mxu0 0.0
    %216 = vmatprep.mubr.f32.mxu0 0.0
    %217 = vmatmul.mubr.f32.gmra.mrb[0].mxu0 %v141
    %v218 = vpop.f32.mrb[0].mxu0
    %v219 = vadd.f32 %v138, %v218
    %v220 = vpop.f32.mrb[0].mxu0
    %221 = vmatprep.mubr.f32.mxu0 0.0
    %222 = vmatmul.mubr.f32.gmra.mrb[0].mxu0 %v144
    %v223 = vpop.f32.mrb[0].mxu0
    %v224 = vadd.f32 %v138, %v223
    %v225 = vpop.f32.mrb[0].mxu0
    %226 = vmatprep.mubr.f32.mxu0 0.0
    %227 = vmatmul.mubr.f32.gmra.mrb[0].mxu0 %v147
    %v228 = vpop.f32.mrb[0].mxu0
    %v229 = vadd.f32 %v138, %v228
    %v230 = vpop.f32.mrb[0].mxu0
    %231 = vmatprep.mubr.f32.mxu0 0.0
    %232 = vmatmul.mubr.f32.gmra.mrb[0].mxu0 %v150
    %v233 = vpop.f32.mrb[0].mxu0
    %v234 = vadd.f32 %v138, %v233
    %v235 = vpop.f32.mrb[0].mxu0
    %236 = vdwg.mxu0
    %vm237 = vcmask 785408
    %238 = vst.msk [vmem:[#allocation7] sm:$0xff] %vm237, %v219
    %239 = vst.msk [vmem:[#allocation7 + $0x8] sm:$0xff] %vm237, %v224
    %240 = vst.msk [vmem:[#allocation7 + $0x10] sm:$0xff] %vm237, %v229
    %241 = vst.msk [vmem:[#allocation7 + $0x18] sm:$0xff] %vm237, %v234
    // Predicated region
    $region30: #{tpu_custom_call.1} parent=1 // pred_check
      _
    $region31: #{tpu_custom_call.1} parent=1 // pred_check_branch
      %243 = sbr.rel (0) target = $region33
    $region32: #{tpu_custom_call.1} parent=1 // pred_region
      %s245 = ssub.s32 512, 512
      %246 = vsyncadd [#allocation4], %s245
      %s247 = sshll.u32 [#allocation7], 4
      %s248 = int_to_ptr.vmem [resolvable:$true] %s247
      %253 = dma.vmem_to_hbm [thread:$0]  %s248, 512, %s5, [#allocation4], 128, 128, 8
    $region33: #{tpu_custom_call.1} parent=1 // pred_fallthru
      _
    // Predicated region
    $region34: #{tpu_custom_call.1} parent=1 // pred_check
      _
    $region35: #{tpu_custom_call.1} parent=1 // pred_check_branch
      %255 = sbr.rel (0) target = $region37
    $region36: #{tpu_custom_call.1} parent=1 // pred_region
      %256 = dma.done [#allocation4], 512
    $region37: #{tpu_custom_call.1} parent=1 // pred_fallthru
      _
    %257 = vsyncpa [#allocation3], 1
    %258 = vsyncpa [#allocation6], 1
    %259 = vsyncpa [#allocation4], 1

</llo_original>
